<compile_context>
chip_gen: v5e
topology: v5e:2x2
jax: 0.10.0
libtpu: 0.0.40
codegen_flags: <defaults>
</compile_context>

<pallas_src>
import functools
import math

import jax
import jax.numpy as jnp
import numpy as np
from jax.experimental import pallas as pl
from jax.experimental.pallas import tpu as pltpu

_VMEM_LIMIT = 48 * 1024 * 1024   # explicit scoped-VMEM budget (safe on v5e/v6e/v7x)


def _round_up(x, m):
    return (x + m - 1) // m * m


# ----------------------------------------------------------------------------
# Tiled matmul kernel: bf16 operands, fp32 accumulation, fused bias + activation
# ----------------------------------------------------------------------------
def _mm_kernel(*refs, act, has_bias):
    if has_bias:
        a_ref, b_ref, bias_ref, o_ref, acc_ref = refs
    else:
        a_ref, b_ref, o_ref, acc_ref = refs
        bias_ref = None

    @pl.when(pl.program_id(2) == 0)
    def _init():
        acc_ref[...] = jnp.zeros_like(acc_ref)

    acc_ref[...] += jnp.dot(a_ref[...], b_ref[...],
                            preferred_element_type=jnp.float32)

    @pl.when(pl.program_id(2) == pl.num_programs(2) - 1)
    def _finalize():
        acc = acc_ref[...]
        if has_bias:
            acc = acc + bias_ref[...]
        if act == "relu":
            acc = jnp.maximum(acc, 0.0)
        elif act == "gelu":
            c = math.sqrt(2.0 / math.pi)
            acc = 0.5 * acc * (1.0 + jnp.tanh(c * (acc + 0.044715 * acc * acc * acc)))
        o_ref[...] = acc.astype(o_ref.dtype)


_MAX_TM, _MAX_TN, _MAX_TK = 512, 512, 1024


@functools.partial(jax.jit, static_argnames=("act", "out_dtype"))
def _matmul_jit(a, b, bias, act, out_dtype):
    M, K = a.shape
    _, N = b.shape
    has_bias = bias is not None

    if a.dtype != jnp.bfloat16:
        a = a.astype(jnp.bfloat16)
    if b.dtype != jnp.bfloat16:
        b = b.astype(jnp.bfloat16)

    # tile = full dim when it fits (no pad); otherwise big tiles + pad.
    tm, Mp = (M, M) if M <= _MAX_TM else (_MAX_TM, _round_up(M, _MAX_TM))
    tn, Np = (N, N) if N <= _MAX_TN else (_MAX_TN, _round_up(N, _MAX_TN))
    tk, Kp = (K, K) if K <= _MAX_TK else (_MAX_TK, _round_up(K, _MAX_TK))

    if (Mp, Kp) != (M, K):
        a = jnp.pad(a, ((0, Mp - M), (0, Kp - K)))
    if (Kp, Np) != (K, N):
        b = jnp.pad(b, ((0, Kp - K), (0, Np - N)))

    ins = [a, b]
    in_specs = [
        pl.BlockSpec((tm, tk), lambda i, j, k: (i, k)),
        pl.BlockSpec((tk, tn), lambda i, j, k: (k, j)),
    ]
    if has_bias:
        bias2 = bias.astype(jnp.float32).reshape(1, N)
        if Np != N:
            bias2 = jnp.pad(bias2, ((0, 0), (0, Np - N)))
        ins.append(bias2)
        in_specs.append(pl.BlockSpec((1, tn), lambda i, j, k: (0, j)))

    out = pl.pallas_call(
        functools.partial(_mm_kernel, act=act, has_bias=has_bias),
        out_shape=jax.ShapeDtypeStruct((Mp, Np), out_dtype),
        grid=(Mp // tm, Np // tn, Kp // tk),
        in_specs=in_specs,
        out_specs=pl.BlockSpec((tm, tn), lambda i, j, k: (i, j)),
        scratch_shapes=[pltpu.VMEM((tm, tn), jnp.float32)],
        compiler_params=pltpu.CompilerParams(
            dimension_semantics=("parallel", "parallel", "arbitrary"),
            vmem_limit_bytes=_VMEM_LIMIT),
    )(*ins)
    if (Mp, Np) != (M, N):
        out = out[:M, :N]
    return out


def pallas_matmul(a, b, bias=None, act=None, out_dtype=jnp.bfloat16):
    """y = a @ b (+ bias) (+ relu/gelu); bf16 MXU operands, fp32 accumulation."""
    return _matmul_jit(a, b, bias, act, out_dtype)


# ----------------------------------------------------------------------------
# Row-tiled LayerNorm kernel: bf16 in/out, fp32 statistics
# ----------------------------------------------------------------------------
def _layernorm_kernel(x_ref, g_ref, b_ref, o_ref, *, eps):
    x = x_ref[...].astype(jnp.float32)
    mean = jnp.mean(x, axis=-1, keepdims=True)
    d = x - mean
    var = jnp.mean(d * d, axis=-1, keepdims=True)
    inv = jax.lax.rsqrt(var + eps)
    o_ref[...] = (d * inv * g_ref[...] + b_ref[...]).astype(o_ref.dtype)


@jax.jit
def pallas_layernorm(x, gamma, beta):
    M, C = x.shape
    if x.dtype != jnp.bfloat16:
        x = x.astype(jnp.bfloat16)
    if M <= 256:
        tm, Mp = M, M
    else:
        tm, Mp = 256, _round_up(M, 256)
        x = jnp.pad(x, ((0, Mp - M), (0, 0)))
    out = pl.pallas_call(
        functools.partial(_layernorm_kernel, eps=1e-6),
        out_shape=jax.ShapeDtypeStruct((Mp, C), jnp.bfloat16),
        grid=(Mp // tm,),
        in_specs=[
            pl.BlockSpec((tm, C), lambda i: (i, 0)),
            pl.BlockSpec((1, C), lambda i: (0, 0)),
            pl.BlockSpec((1, C), lambda i: (0, 0)),
        ],
        out_specs=pl.BlockSpec((tm, C), lambda i: (i, 0)),
        compiler_params=pltpu.CompilerParams(
            dimension_semantics=("parallel",),
            vmem_limit_bytes=_VMEM_LIMIT),
    )(x, gamma.astype(jnp.float32).reshape(1, C), beta.astype(jnp.float32).reshape(1, C))
    return out if Mp == M else out[:M]


# ----------------------------------------------------------------------------
# Flash-style attention: grid (B*nh, q-tile, kv-tile), online softmax, fp32 scratch
# ----------------------------------------------------------------------------
def _flash_attn_kernel(q_ref, k_ref, v_ref, o_ref, m_ref, l_ref, acc_ref, *, T, scale):
    kv = pl.program_id(2)

    @pl.when(kv == 0)
    def _init():
        m_ref[...] = jnp.full_like(m_ref, -1e30)
        l_ref[...] = jnp.zeros_like(l_ref)
        acc_ref[...] = jnp.zeros_like(acc_ref)

    q = q_ref[0]                      # (tq, hd) bf16
    k = k_ref[0]                      # (tk, hd) bf16
    v = v_ref[0]
    tkk = k.shape[0]

    s = jax.lax.dot_general(q, k, (((1,), (1,)), ((), ())),
                            preferred_element_type=jnp.float32) * scale
    key_idx = kv * tkk + jax.lax.broadcasted_iota(jnp.int32, s.shape, 1)
    s = jnp.where(key_idx < T, s, -1e30)          # mask padded keys

    m_prev = m_ref[...]
    m_new = jnp.maximum(m_prev, jnp.max(s, axis=-1, keepdims=True))
    alpha = jnp.exp(m_prev - m_new)
    p = jnp.exp(s - m_new)
    l_ref[...] = alpha * l_ref[...] + jnp.sum(p, axis=-1, keepdims=True)
    acc_ref[...] = alpha * acc_ref[...] + jnp.dot(p.astype(v.dtype), v,
                                                  preferred_element_type=jnp.float32)
    m_ref[...] = m_new

    @pl.when(kv == pl.num_programs(2) - 1)
    def _finalize():
        o_ref[0] = (acc_ref[...] * pl.reciprocal(l_ref[...], approx=True)
                    ).astype(o_ref.dtype)


@jax.jit
def pallas_attention(q, k, v):
    """softmax(q k^T / sqrt(hd)) v ; q,k,v: (B*nh, T, hd) bf16 -> (B*nh, T, hd) bf16."""
    BH, T, hd = q.shape
    scale = 1.0 / math.sqrt(hd)
    if q.dtype != jnp.bfloat16:
        q, k, v = q.astype(jnp.bfloat16), k.astype(jnp.bfloat16), v.astype(jnp.bfloat16)
    if T <= 256:
        Tp, tq, tkk = T, T, T
    else:
        tq, tkk = 256, 256
        Tp = _round_up(T, 256)
    if Tp != T:
        padc = ((0, 0), (0, Tp - T), (0, 0))
        q, k, v = jnp.pad(q, padc), jnp.pad(k, padc), jnp.pad(v, padc)

    out = pl.pallas_call(
        functools.partial(_flash_attn_kernel, T=T, scale=scale),
        out_shape=jax.ShapeDtypeStruct((BH, Tp, hd), jnp.bfloat16),
        grid=(BH, Tp // tq, Tp // tkk),
        in_specs=[
            pl.BlockSpec((1, tq, hd), lambda b, i, j: (b, i, 0)),
            pl.BlockSpec((1, tkk, hd), lambda b, i, j: (b, j, 0)),
            pl.BlockSpec((1, tkk, hd), lambda b, i, j: (b, j, 0)),
        ],
        out_specs=pl.BlockSpec((1, tq, hd), lambda b, i, j: (b, i, 0)),
        scratch_shapes=[pltpu.VMEM((tq, 1), jnp.float32),
                        pltpu.VMEM((tq, 1), jnp.float32),
                        pltpu.VMEM((tq, hd), jnp.float32)],
        compiler_params=pltpu.CompilerParams(
            dimension_semantics=("parallel", "parallel", "arbitrary"),
            vmem_limit_bytes=_VMEM_LIMIT),
    )(q, k, v)
    return out if Tp == T else out[:, :T, :]


# ----------------------------------------------------------------------------
# 3x3 conv kernel (padding=1), NHWC, row-tiled: grid (B, H-tile), manual halo DMA.
# ----------------------------------------------------------------------------
_CONV_ROWS = 8


def _conv3x3_kernel(x_hbm, w_ref, *rest, act, has_bias):
    if has_bias:
        b_ref, o_ref, xbuf, sem = rest
    else:
        o_ref, xbuf, sem = rest
        b_ref = None
    b = pl.program_id(0)
    i = pl.program_id(1)
    R, Wd, F = o_ref.shape[1], o_ref.shape[2], o_ref.shape[3]
    C = xbuf.shape[2]

    # halo DMA: rows [i*R, i*R + R + 2) of the zero-padded image
    cp = pltpu.make_async_copy(x_hbm.at[b, pl.ds(i * R, R + 2)], xbuf, sem)
    cp.start()
    cp.wait()

    blk = xbuf[...]                                   # (R+2, Wd+2, C) bf16
    acc = jnp.zeros((R * Wd, F), jnp.float32)
    for kh in range(3):
        for kw in range(3):
            tap = jax.lax.slice(blk, (kh, kw, 0), (kh + R, kw + Wd, C))
            tap = tap.reshape(R * Wd, C)
            w_tap = w_ref[(kh * 3 + kw) * C:(kh * 3 + kw + 1) * C, :]
            acc = acc + jnp.dot(tap, w_tap, preferred_element_type=jnp.float32)
    if has_bias:
        acc = acc + b_ref[...]
    if act == "relu":
        acc = jnp.maximum(acc, 0.0)
    o_ref[0] = acc.reshape(R, Wd, F).astype(o_ref.dtype)


@functools.partial(jax.jit, static_argnames=("act",))
def _conv3x3_jit(x, w, bias, act):
    # x: (B, H, W, C) NHWC ; w: (9*C, F) slab ; bias: (F,) or None. stride=1, padding=1.
    B, H, W, C = x.shape
    F = w.shape[1]
    has_bias = bias is not None
    if x.dtype != jnp.bfloat16:
        x = x.astype(jnp.bfloat16)
    if w.dtype != jnp.bfloat16:
        w = w.astype(jnp.bfloat16)

    R = _CONV_ROWS
    Hc = _round_up(H, R)
    xh = jnp.pad(x, ((0, 0), (1, Hc - H + 1), (1, 1), (0, 0)))   # halo + row-tile pad

    ins = [xh, w]
    in_specs = [
        pl.BlockSpec(memory_space=pl.ANY),                       # stays in HBM, manual DMA
        pl.BlockSpec((9 * C, F), lambda b, i: (0, 0)),
    ]
    if has_bias:
        ins.append(bias.astype(jnp.float32).reshape(1, F))
        in_specs.append(pl.BlockSpec((1, F), lambda b, i: (0, 0)))

    out = pl.pallas_call(
        functools.partial(_conv3x3_kernel, act=act, has_bias=has_bias),
        out_shape=jax.ShapeDtypeStruct((B, Hc, W, F), jnp.bfloat16),
        grid=(B, Hc // R),
        in_specs=in_specs,
        out_specs=pl.BlockSpec((1, R, W, F), lambda b, i: (b, i, 0, 0)),
        scratch_shapes=[pltpu.VMEM((R + 2, W + 2, C), jnp.bfloat16),
                        pltpu.SemaphoreType.DMA],
        compiler_params=pltpu.CompilerParams(
            dimension_semantics=("parallel", "parallel"),
            vmem_limit_bytes=_VMEM_LIMIT),
    )(*ins)
    return out[:, :H] if Hc != H else out


def conv2d_3x3(x, w, b=None, stride=1, act=None):
    y = _conv3x3_jit(x, w, b, act)
    if stride == 2:
        # TODO(synk): compute stride-2 directly in the kernel (this does 4x the MACs).
        y = y[:, ::2, ::2, :]
    return y


# ----------------------------------------------------------------------------
# NHWC conv / resize wrappers (glue reshapes in JAX, compute inside Pallas kernels)
# ----------------------------------------------------------------------------
def conv2d_1x1(x, w, b=None, act=None, out_dtype=jnp.bfloat16):
    B, H, W, C = x.shape
    y = pallas_matmul(x.reshape(B * H * W, C), w, b, act=act, out_dtype=out_dtype)
    return y.reshape(B, H, W, -1)


def conv_transpose_same_kernel_stride(x, w, b_tiled, k):
    # PyTorch ConvTranspose2d(Cin, Cout, kernel_size=k, stride=k): non-overlapping upsample.
    # w pre-reshaped to (Cin, k*k*Cout); bias pre-tiled to (k*k*Cout,).
    B, H, W, C = x.shape
    Cout = w.shape[1] // (k * k)
    y = pallas_matmul(x.reshape(B * H * W, C), w, b_tiled)
    y = y.reshape(B, H, W, k, k, Cout).transpose(0, 1, 3, 2, 4, 5)
    return y.reshape(B, H * k, W * k, Cout)


def _bilinear_matrix(n_in, n_out):
    # align_corners=True linear interpolation matrix (n_out, n_in)
    m = np.zeros((n_out, n_in), np.float32)
    if n_in == 1:
        m[:, 0] = 1.0
        return jnp.asarray(m)
    for i in range(n_out):
        src = 0.0 if n_out == 1 else i * (n_in - 1) / (n_out - 1)
        f = int(np.floor(src))
        f = min(f, n_in - 1)
        t = src - f
        m[i, f] += 1.0 - t
        if t > 0.0 and f + 1 < n_in:
            m[i, f + 1] += t
    return jnp.asarray(m)


def bilinear_resize(x, out_h, out_w):
    # F.interpolate(mode='bilinear', align_corners=True), NHWC, as two separable Pallas matmuls.
    B, H, W, C = x.shape
    wh = _bilinear_matrix(H, out_h)            # (Ho, H)
    ww = _bilinear_matrix(W, out_w)            # (Wo, W)
    t = x.transpose(0, 2, 3, 1).reshape(B * W * C, H)
    t = pallas_matmul(t, wh.T)                                 # resize H
    t = t.reshape(B, W, C, out_h).transpose(0, 3, 2, 1).reshape(B * out_h * C, W)
    t = pallas_matmul(t, ww.T)                                 # resize W
    return t.reshape(B, out_h, C, out_w).transpose(0, 1, 3, 2)   # (B, Ho, Wo, C)


# ----------------------------------------------------------------------------
# DINOv2-style backbone (simplified ViT) -- get_intermediate_layers
# ----------------------------------------------------------------------------
def dinov2_get_intermediate_layers(x, bp, take_idx):
    B, Cin, H, W = x.shape
    p = bp["patch"]
    ph, pw = H // p, W // p
    E = bp["embed_dim"]
    nh = bp["num_heads"]
    hd = E // nh

    # patch embedding (Conv2d(3, E, 14, stride=14)) as a matmul
    xb = x.astype(jnp.bfloat16)
    patches = xb.reshape(B, Cin, ph, p, pw, p).transpose(0, 2, 4, 1, 3, 5)
    patches = patches.reshape(B * ph * pw, Cin * p * p)
    tok = pallas_matmul(patches, bp["patch_w"], bp["patch_b"])
    tok = tok.reshape(B, ph * pw, E)
    cls = jnp.broadcast_to(bp["cls_token"], (B, 1, E)).astype(jnp.bfloat16)
    h = jnp.concatenate([cls, tok], axis=1) + bp["pos_embed"]
    T = h.shape[1]

    taken = []
    for li, blk in enumerate(bp["blocks"]):
        # attention (QKV packed; flash kernel over (B*nh, q-tile, kv-tile))
        hn = pallas_layernorm(h.reshape(B * T, E), blk["ln1_g"], blk["ln1_b"])
        qkv = pallas_matmul(hn, blk["qkv_w"], blk["qkv_b"])
        qkv = qkv.reshape(B, T, 3, nh, hd).transpose(2, 0, 3, 1, 4).reshape(3, B * nh, T, hd)
        a = pallas_attention(qkv[0], qkv[1], qkv[2])                  # (B*nh, T, hd)
        a = a.reshape(B, nh, T, hd).transpose(0, 2, 1, 3).reshape(B * T, E)
        a = pallas_matmul(a, blk["proj_w"], blk["proj_b"]).reshape(B, T, E)
        h = h + a * blk["ls1"]
        # MLP (GELU fused into the fc1 matmul epilogue)
        hn = pallas_layernorm(h.reshape(B * T, E), blk["ln2_g"], blk["ln2_b"])
        m = pallas_matmul(hn, blk["fc1_w"], blk["fc1_b"], act="gelu")
        m = pallas_matmul(m, blk["fc2_w"], blk["fc2_b"]).reshape(B, T, E)
        h = h + m * blk["ls2"]
        if li in take_idx:
            taken.append(h)

    feats = []
    for o in taken:
        on = pallas_layernorm(o.reshape(B * T, E), bp["norm_g"], bp["norm_b"]).reshape(B, T, E)
        feats.append((on[:, 1:, :], on[:, 0, :]))   # (patch_tokens, cls_token)
    return feats


# ----------------------------------------------------------------------------
# DPT segmentation head (NHWC end-to-end)
# ----------------------------------------------------------------------------
def _rcu(x, w1, b1, w2, b2):
    out = jnp.maximum(x, 0.0)
    out = conv2d_3x3(out, w1, b1, act="relu")
    out = conv2d_3x3(out, w2, b2)
    return out + x


def _fusion(pb, x0, x1=None, size=None):
    out = x0
    if x1 is not None:
        out = out + _rcu(x1, pb["rcu1_w1"], pb["rcu1_b1"], pb["rcu1_w2"], pb["rcu1_b2"])
    out = _rcu(out, pb["rcu2_w1"], pb["rcu2_b1"], pb["rcu2_w2"], pb["rcu2_b2"])
    if size is None:
        size = (out.shape[1] * 2, out.shape[2] * 2)
    out = bilinear_resize(out, int(size[0]), int(size[1]))
    out = conv2d_1x1(out, pb["out_w"], pb["out_b"])
    return out


def dpt_segmentation_head(feats, ph, pw, hp):
    outs = []
    for i, (patch_tok, _cls_tok) in enumerate(feats):   # use_clstoken=False
        B, N, C = patch_tok.shape
        x = patch_tok.reshape(B, ph, pw, C)              # token grid -> NHWC (pure reshape)
        x = conv2d_1x1(x, hp["proj_w"][i], hp["proj_b"][i])
        if i == 0:
            x = conv_transpose_same_kernel_stride(x, hp["rz0_w"], hp["rz0_b"], 4)
        elif i == 1:
            x = conv_transpose_same_kernel_stride(x, hp["rz1_w"], hp["rz1_b"], 2)
        elif i == 3:
            x = conv2d_3x3(x, hp["rz3_w"], hp["rz3_b"], stride=2)
        outs.append(x)
    layer_1, layer_2, layer_3, layer_4 = outs

    l1r = conv2d_3x3(layer_1, hp["rn1_w"])      # bias=False
    l2r = conv2d_3x3(layer_2, hp["rn2_w"])
    l3r = conv2d_3x3(layer_3, hp["rn3_w"])
    l4r = conv2d_3x3(layer_4, hp["rn4_w"])

    path_4 = _fusion(hp["ref4"], l4r, None, size=l3r.shape[1:3])
    path_3 = _fusion(hp["ref3"], path_4, l3r, size=l2r.shape[1:3])
    path_2 = _fusion(hp["ref2"], path_3, l2r, size=l1r.shape[1:3])
    path_1 = _fusion(hp["ref1"], path_2, l1r)

    out = conv2d_3x3(path_1, hp["oc1_w"], hp["oc1_b"])
    out = bilinear_resize(out, ph * 14, pw * 14)
    out = conv2d_3x3(out, hp["oc2a_w"], hp["oc2a_b"], act="relu")
    out = conv2d_1x1(out, hp["oc2b_w"], hp["oc2b_b"], out_dtype=jnp.float32)   # fp32 logits
    return out   # NHWC


def dino2seg_forward(x, params, intermediate_idx=(2, 5, 8, 11)):
    ph, pw = x.shape[-2] // 14, x.shape[-1] // 14
    feats = dinov2_get_intermediate_layers(x, params["backbone"], intermediate_idx)
    out = dpt_segmentation_head(feats, ph, pw, params["head"])
    logits = jnp.transpose(out, (0, 3, 1, 2))            # back to NCHW for torch parity
    if logits.shape[1] == 1:                             # torch .squeeze(1) semantics
        logits = jnp.squeeze(logits, axis=1)
    return logits


# ----------------------------------------------------------------------------
# Deterministic parameter init (weights stored pre-cast bf16 / kernel-friendly shapes)
# ----------------------------------------------------------------------------
class _KeyIter:
    def __init__(self, key):
        self._key = key

    def normal(self, shape, scale=0.05):
        self._key, sub = jax.random.split(self._key)
        return scale * jax.random.normal(sub, shape, dtype=jnp.float32)


def init_params(key, *, embed_dim=32, depth=12, num_heads=2, mlp_ratio=4,
                patch=14, in_chans=3, num_patches=16,
                out_channels=(8, 16, 32, 32), features=16, num_classes=5):
    it = _KeyIter(key)
    n = it.normal
    nb = lambda s, scale=0.05: n(s, scale).astype(jnp.bfloat16)       # bf16 weights
    ones = lambda s: jnp.ones(s, jnp.float32)
    zeros = lambda s: jnp.zeros(s, jnp.float32)
    hidden = embed_dim * mlp_ratio

    blocks = []
    for _ in range(depth):
        blocks.append(dict(
            ln1_g=ones((embed_dim,)), ln1_b=zeros((embed_dim,)),
            qkv_w=nb((embed_dim, 3 * embed_dim)), qkv_b=n((3 * embed_dim,)),
            proj_w=nb((embed_dim, embed_dim)), proj_b=n((embed_dim,)),
            ls1=jnp.ones((embed_dim,), jnp.bfloat16),
            ln2_g=ones((embed_dim,)), ln2_b=zeros((embed_dim,)),
            fc1_w=nb((embed_dim, hidden)), fc1_b=n((hidden,)),
            fc2_w=nb((hidden, embed_dim)), fc2_b=n((embed_dim,)),
            ls2=jnp.ones((embed_dim,), jnp.bfloat16),
        ))
    backbone = dict(
        embed_dim=embed_dim, num_heads=num_heads, patch=patch,
        patch_w=nb((in_chans * patch * patch, embed_dim)), patch_b=n((embed_dim,)),
        cls_token=nb((1, 1, embed_dim)), pos_embed=nb((1, 1 + num_patches, embed_dim)),
        blocks=blocks, norm_g=ones((embed_dim,)), norm_b=zeros((embed_dim,)),
    )

    def ffb():
        # 3x3 conv weights stored as (9*Cin, Cout) slabs; 1x1 conv weights as (Cin, Cout)
        return dict(
            rcu1_w1=nb((9 * features, features)), rcu1_b1=n((features,)),
            rcu1_w2=nb((9 * features, features)), rcu1_b2=n((features,)),
            rcu2_w1=nb((9 * features, features)), rcu2_b1=n((features,)),
            rcu2_w2=nb((9 * features, features)), rcu2_b2=n((features,)),
            out_w=nb((features, features)), out_b=n((features,)),
        )

    oc = out_channels
    head = dict(
        proj_w=[nb((embed_dim, c)) for c in oc],
        proj_b=[n((c,)) for c in oc],
        rz0_w=nb((oc[0], 16 * oc[0])), rz0_b=jnp.tile(n((oc[0],)), 16),
        rz1_w=nb((oc[1], 4 * oc[1])), rz1_b=jnp.tile(n((oc[1],)), 4),
        rz3_w=nb((9 * oc[3], oc[3])), rz3_b=n((oc[3],)),
        rn1_w=nb((9 * oc[0], features)),
        rn2_w=nb((9 * oc[1], features)),
        rn3_w=nb((9 * oc[2], features)),
        rn4_w=nb((9 * oc[3], features)),
        ref1=ffb(), ref2=ffb(), ref3=ffb(), ref4=ffb(),
        oc1_w=nb((9 * features, features // 2)), oc1_b=n((features // 2,)),
        oc2a_w=nb((9 * (features // 2), 32)), oc2a_b=n((32,)),   # head_features_2 = 32
        oc2b_w=nb((32, num_classes)), oc2b_b=n((num_classes,)),
    )
    return dict(backbone=backbone, head=head)


# ----------------------------------------------------------------------------
if __name__ == "__main__":
    key = jax.random.PRNGKey(0)
    k_in, k_par = jax.random.split(key)

    B, H, W = 2, 56, 56                   # 4x4 = 16 patches of 14x14
    num_classes = 5
    x = jax.random.normal(k_in, (B, 3, H, W), dtype=jnp.float32)
    params = init_params(k_par, embed_dim=32, depth=12, num_heads=2,
                         num_patches=(H // 14) * (W // 14),
                         out_channels=(8, 16, 32, 32), features=16,
                         num_classes=num_classes)

    out = dino2seg_forward(x, params)
    out = jax.block_until_ready(out)

    assert out.shape == (B, num_classes, H, W), out.shape
    assert bool(jnp.isfinite(out).all())
    print("KERNEL_OK")
</pallas_src>

<mosaic_0001>
module attributes {stable_mosaic.version = 11 : i64} {
  func.func @_mm_kernel(%arg0: i32, %arg1: i32, %arg2: i32, %arg3: memref<32x588xbf16, #tpu.memory_space<vmem>>, %arg4: memref<588x32xbf16, #tpu.memory_space<vmem>>, %arg5: memref<1x32xf32, #tpu.memory_space<vmem>>, %arg6: memref<32x32xbf16, #tpu.memory_space<vmem>>, %arg7: memref<32x32xf32, #tpu.memory_space<vmem>>) attributes {dimension_semantics = [#tpu.dimension_semantics<parallel>, #tpu.dimension_semantics<parallel>, #tpu.dimension_semantics<arbitrary>], iteration_bounds = array<i64: 1, 1, 1>, scalar_prefetch = 0 : i64, scratch_operands = 1 : i64, tpu.core_type = #tpu.core_type<tc>, window_params = [{transform_indices = @transform_0, window_bounds = array<i64: 32, 588>}, {transform_indices = @transform_1, window_bounds = array<i64: 588, 32>}, {transform_indices = @transform_2, window_bounds = array<i64: 1, 32>}, {transform_indices = @transform_3, window_bounds = array<i64: 32, 32>}]} {
    %c0_i32 = arith.constant 0 : i32
    %0 = arith.cmpi eq, %arg2, %c0_i32 : i32
    %1 = arith.extui %0 : i1 to i32
    %c0_i32_0 = arith.constant 0 : i32
    %2 = arith.cmpi ne, %1, %c0_i32_0 : i32
    scf.if %2 {
      %cst_10 = arith.constant 0.000000e+00 : f32
      %12 = vector.broadcast %cst_10 : f32 to vector<32x32xf32>
      %c0_11 = arith.constant 0 : index
      %c0_12 = arith.constant 0 : index
      %13 = vector.load %arg7[%c0_11, %c0_12] : memref<32x32xf32, #tpu.memory_space<vmem>>, vector<32x32xf32>
      tpu.vector_store %arg7[%c0_11, %c0_12], %12 {strides = array<i32>} : memref<32x32xf32, #tpu.memory_space<vmem>>, vector<32x32xf32>,
    } else {
    }
    %c0 = arith.constant 0 : index
    %c0_1 = arith.constant 0 : index
    %3 = vector.load %arg7[%c0, %c0_1] : memref<32x32xf32, #tpu.memory_space<vmem>>, vector<32x32xf32>
    %c0_2 = arith.constant 0 : index
    %c0_3 = arith.constant 0 : index
    %4 = vector.load %arg3[%c0_2, %c0_3] : memref<32x588xbf16, #tpu.memory_space<vmem>>, vector<32x588xbf16>
    %c0_4 = arith.constant 0 : index
    %c0_5 = arith.constant 0 : index
    %5 = vector.load %arg4[%c0_4, %c0_5] : memref<588x32xbf16, #tpu.memory_space<vmem>>, vector<588x32xbf16>
    %cst = arith.constant dense<0.000000e+00> : vector<32x32xf32>
    %6 = tpu.matmul %4, %5, %cst {dimension_numbers = #tpu.dot_dimension_numbers<[1], [0], [0], [1], [0, 0, 1, 1], [], []>} : vector<32x588xbf16>, vector<588x32xbf16>, vector<32x32xf32> -> vector<32x32xf32>
    %7 = arith.addf %3, %6 : vector<32x32xf32>
    %c0_6 = arith.constant 0 : index
    %c0_7 = arith.constant 0 : index
    %8 = vector.load %arg7[%c0_6, %c0_7] : memref<32x32xf32, #tpu.memory_space<vmem>>, vector<32x32xf32>
    tpu.vector_store %arg7[%c0_6, %c0_7], %7 {strides = array<i32>} : memref<32x32xf32, #tpu.memory_space<vmem>>, vector<32x32xf32>,
    %c0_i32_8 = arith.constant 0 : i32
    %9 = arith.cmpi eq, %arg2, %c0_i32_8 : i32
    %10 = arith.extui %9 : i1 to i32
    %c0_i32_9 = arith.constant 0 : i32
    %11 = arith.cmpi ne, %10, %c0_i32_9 : i32
    scf.if %11 {
      %c0_10 = arith.constant 0 : index
      %c0_11 = arith.constant 0 : index
      %12 = vector.load %arg7[%c0_10, %c0_11] : memref<32x32xf32, #tpu.memory_space<vmem>>, vector<32x32xf32>
      %c0_12 = arith.constant 0 : index
      %c0_13 = arith.constant 0 : index
      %13 = vector.load %arg5[%c0_12, %c0_13] : memref<1x32xf32, #tpu.memory_space<vmem>>, vector<1x32xf32>
      %14 = vector.broadcast %13 : vector<1x32xf32> to vector<32x32xf32>
      %15 = arith.addf %12, %14 : vector<32x32xf32>
      %16 = arith.truncf %15 : vector<32x32xf32> to vector<32x32xbf16>
      %c0_14 = arith.constant 0 : index
      %c0_15 = arith.constant 0 : index
      %17 = vector.load %arg6[%c0_14, %c0_15] : memref<32x32xbf16, #tpu.memory_space<vmem>>, vector<32x32xbf16>
      tpu.vector_store %arg6[%c0_14, %c0_15], %16 {strides = array<i32>} : memref<32x32xbf16, #tpu.memory_space<vmem>>, vector<32x32xbf16>,
    } else {
    }
    return
  }
  func.func @transform_0(%arg0: i32, %arg1: i32, %arg2: i32) -> (i32, i32) {
    %c0_i32 = arith.constant 0 : i32
    return %arg0, %arg2 : i32, i32
  }
  func.func @transform_1(%arg0: i32, %arg1: i32, %arg2: i32) -> (i32, i32) {
    %c0_i32 = arith.constant 0 : i32
    return %arg2, %arg1 : i32, i32
  }
  func.func @transform_2(%arg0: i32, %arg1: i32, %arg2: i32) -> (i32, i32) {
    %c0_i32 = arith.constant 0 : i32
    %c0_i32_0 = arith.constant 0 : i32
    return %c0_i32, %arg1 : i32, i32
  }
  func.func @transform_3(%arg0: i32, %arg1: i32, %arg2: i32) -> (i32, i32) {
    %c0_i32 = arith.constant 0 : i32
    return %arg0, %arg1 : i32, i32
  }
}

</mosaic_0001>

<llo_original>
// kernel: _matmul_jit.1
$region0: #{_matmul_jit.1}
  #allocation0 [shape = 'u32[]', space=smem, size = 0x4, offset = 0x4, fixed_abs, tag = 'smem constant byte address 0x4 - core index']
  #allocation1 [shape = 'u32[72,128]{1,0:T(1,128)}', space=vmem, size = 0x9000, scoped, tag = 'internal scratch']
  #allocation2 [shape = 'f32[32,32]{1,0:T(8,128)}', space=vmem, size = 0x4000, scoped, tag = 'scratch operand']
  %s0 = inlined_call_operand.vmem [shape: bf16[32,588], index: 0, kind: input, shape index: {}]
  %s1 = inlined_call_operand.vmem [shape: bf16[588,32], index: 1, kind: input, shape index: {}]
  %s2 = inlined_call_operand.vmem [shape: f32[1,32], index: 2, kind: input, shape index: {}]
  %s3 = inlined_call_operand.hbm [shape: bf16[32,32], index: 3, kind: output, shape index: {}]
  %s4 = sld [smem:[#allocation0]]
  $region30: #{_matmul_jit.1} parent=0
    _
  %s6 = ssub.s32 1, %s4
  %s7 = scalar_select 0, %s6, %s4
  $region1: #{_matmul_jit.1} parent=0
    #allocation3 [shape = 'u8[8192]{0}', space=vmem, size = 0x2000, scoped, tag = 'output window, operand 0, single buffered']
    #allocation4 [shape = 's32[1]{0}', space=sflag, size = 0x4, scoped, tag = 'scoped memory for _matmul_jit.1']
    %8 = vsyncpa [#allocation4], 0
    // Predicated region
    $region2: #{_matmul_jit.1} parent=1 // pred_check
      _
    $region3: #{_matmul_jit.1} parent=1 // pred_check_branch
      %10 = sbr.rel (0) target = $region5
    $region4: #{_matmul_jit.1} parent=1 // pred_region
      _
    $region5: #{_matmul_jit.1} parent=1 // pred_fallthru
      _
    // Predicated region
    $region6: #{_matmul_jit.1} parent=1 // pred_check
      _
    $region7: #{_matmul_jit.1} parent=1 // pred_check_branch
      %12 = sbr.rel (0) target = $region9
    $region8: #{_matmul_jit.1} parent=1 // pred_region
      _
    $region9: #{_matmul_jit.1} parent=1 // pred_fallthru
      _
    // Predicated region
    $region10: #{_matmul_jit.1} parent=1 // pred_check
      _
    $region11: #{_matmul_jit.1} parent=1 // pred_check_branch
      %14 = sbr.rel (0) target = $region13
    $region12: #{_matmul_jit.1} parent=1 // pred_region
      _
    $region13: #{_matmul_jit.1} parent=1 // pred_fallthru
      _
    %p16 = scmp.eq.s32.totalorder 0, 0
    // Predicated region
    $region14: #{_matmul_jit.1} parent=1 // pred_check
      %p17 = pneg %p16
    $region15: #{_matmul_jit.1} parent=1 // pred_check_branch
      %19 = sbr.rel (%p17) target = $region17
    $region16: #{_matmul_jit.1} parent=1 // pred_region
      %vm20 = vcmask 261120
      %21 = vst.msk [vmem:[#allocation2] sm:$0xff] %vm20, 0.0
      %22 = vst.msk [vmem:[#allocation2 + $0x8] sm:$0xff] %vm20, 0.0
      %23 = vst.msk [vmem:[#allocation2 + $0x10] sm:$0xff] %vm20, 0.0
      %24 = vst.msk [vmem:[#allocation2 + $0x18] sm:$0xff] %vm20, 0.0
    $region17: #{_matmul_jit.1} parent=1 // pred_fallthru
      _
    %v25 = vld [vmem:[#allocation2] sm:$0xff]
    %v26 = vld [vmem:[#allocation2 + $0x8] sm:$0xff]
    %v27 = vld [vmem:[#allocation2 + $0x10] sm:$0xff]
    %v28 = vld [vmem:[#allocation2 + $0x18] sm:$0xff]
    %v29 = vld [vmem:[%s0] sm:$0xff]
    %v30 = vld [vmem:[%s0 + $0x8] sm:$0xff]
    %v31 = vld [vmem:[%s0 + $0x10] sm:$0xf]
    %v32 = vld [vmem:[%s0 + $0x14] sm:$0xff]
    %v33 = vld [vmem:[%s0 + $0x1c] sm:$0xff]
    %v34 = vld [vmem:[%s0 + $0x24] sm:$0xf]
    %v35 = vld [vmem:[%s0 + $0x28] sm:$0xff]
    %v36 = vld [vmem:[%s0 + $0x30] sm:$0xff]
    %v37 = vld [vmem:[%s0 + $0x38] sm:$0xf]
    %v38 = vld [vmem:[%s0 + $0x3c] sm:$0xff]
    %v39 = vld [vmem:[%s0 + $0x44] sm:$0xff]
    %v40 = vld [vmem:[%s0 + $0x4c] sm:$0xf]
    %v41 = vld [vmem:[%s1] sm:$0xf]
    %v42 = vld [vmem:[%s1 + $0x4] sm:$0xf]
    %v43 = vld [vmem:[%s1 + $0x8] sm:$0xf]
    %v44 = vld [vmem:[%s1 + $0xc] sm:$0xf]
    %v45 = vld [vmem:[%s1 + $0x10] sm:$0xf]
    %v46 = vld [vmem:[%s1 + $0x14] sm:$0xf]
    %v47 = vld [vmem:[%s1 + $0x18] sm:$0xf]
    %v48 = vld [vmem:[%s1 + $0x1c] sm:$0xf]
    %v49 = vld [vmem:[%s1 + $0x20] sm:$0xf]
    %v50 = vld [vmem:[%s1 + $0x24] sm:$0xf]
    %v51 = vld [vmem:[%s1 + $0x28] sm:$0xf]
    %v52 = vld [vmem:[%s1 + $0x2c] sm:$0xf]
    %v53 = vld [vmem:[%s1 + $0x30] sm:$0xf]
    %v54 = vld [vmem:[%s1 + $0x34] sm:$0xf]
    %v55 = vld [vmem:[%s1 + $0x38] sm:$0xf]
    %v56 = vld [vmem:[%s1 + $0x3c] sm:$0xf]
    %v57 = vld [vmem:[%s1 + $0x40] sm:$0xf]
    %v58 = vld [vmem:[%s1 + $0x44] sm:$0xf]
    %v59 = vld [vmem:[%s1 + $0x48] sm:$0xf]
    %v60 = vld [vmem:[%s1 + $0x4c] sm:$0xf]
    %v61 = vld [vmem:[%s1 + $0x50] sm:$0xf]
    %v62 = vld [vmem:[%s1 + $0x54] sm:$0xf]
    %v63 = vld [vmem:[%s1 + $0x58] sm:$0xf]
    %v64 = vld [vmem:[%s1 + $0x5c] sm:$0xf]
    %v65 = vld [vmem:[%s1 + $0x60] sm:$0xf]
    %v66 = vld [vmem:[%s1 + $0x64] sm:$0xf]
    %v67 = vld [vmem:[%s1 + $0x68] sm:$0xf]
    %v68 = vld [vmem:[%s1 + $0x6c] sm:$0xf]
    %v69 = vld [vmem:[%s1 + $0x70] sm:$0xf]
    %v70 = vld [vmem:[%s1 + $0x74] sm:$0xf]
    %v71 = vld [vmem:[%s1 + $0x78] sm:$0xf]
    %v72 = vld [vmem:[%s1 + $0x7c] sm:$0xf]
    %v73 = vld [vmem:[%s1 + $0x80] sm:$0xf]
    %v74 = vld [vmem:[%s1 + $0x84] sm:$0xf]
    %v75 = vld [vmem:[%s1 + $0x88] sm:$0xf]
    %v76 = vld [vmem:[%s1 + $0x8c] sm:$0xf]
    %v77 = vld [vmem:[%s1 + $0x90] sm:$0xf]
    %v78 = vld [vmem:[%s1 + $0x94] sm:$0xf]
    %v79 = vld [vmem:[%s1 + $0x98] sm:$0xf]
    %v80 = vld [vmem:[%s1 + $0x9c] sm:$0xf]
    %v81 = vld [vmem:[%s1 + $0xa0] sm:$0xf]
    %v82 = vld [vmem:[%s1 + $0xa4] sm:$0xf]
    %v83 = vld [vmem:[%s1 + $0xa8] sm:$0xf]
    %v84 = vld [vmem:[%s1 + $0xac] sm:$0xf]
    %v85 = vld [vmem:[%s1 + $0xb0] sm:$0xf]
    %v86 = vld [vmem:[%s1 + $0xb4] sm:$0xf]
    %v87 = vld [vmem:[%s1 + $0xb8] sm:$0xf]
    %v88 = vld [vmem:[%s1 + $0xbc] sm:$0xf]
    %v89 = vld [vmem:[%s1 + $0xc0] sm:$0xf]
    %v90 = vld [vmem:[%s1 + $0xc4] sm:$0xf]
    %v91 = vld [vmem:[%s1 + $0xc8] sm:$0xf]
    %v92 = vld [vmem:[%s1 + $0xcc] sm:$0xf]
    %v93 = vld [vmem:[%s1 + $0xd0] sm:$0xf]
    %v94 = vld [vmem:[%s1 + $0xd4] sm:$0xf]
    %v95 = vld [vmem:[%s1 + $0xd8] sm:$0xf]
    %v96 = vld [vmem:[%s1 + $0xdc] sm:$0xf]
    %v97 = vld [vmem:[%s1 + $0xe0] sm:$0xf]
    %v98 = vld [vmem:[%s1 + $0xe4] sm:$0xf]
    %v99 = vld [vmem:[%s1 + $0xe8] sm:$0xf]
    %v100 = vld [vmem:[%s1 + $0xec] sm:$0xf]
    %v101 = vld [vmem:[%s1 + $0xf0] sm:$0xf]
    %v102 = vld [vmem:[%s1 + $0xf4] sm:$0xf]
    %v103 = vld [vmem:[%s1 + $0xf8] sm:$0xf]
    %v104 = vld [vmem:[%s1 + $0xfc] sm:$0xf]
    %v105 = vld [vmem:[%s1 + $0x100] sm:$0xf]
    %v106 = vld [vmem:[%s1 + $0x104] sm:$0xf]
    %v107 = vld [vmem:[%s1 + $0x108] sm:$0xf]
    %v108 = vld [vmem:[%s1 + $0x10c] sm:$0xf]
    %v109 = vld [vmem:[%s1 + $0x110] sm:$0xf]
    %v110 = vld [vmem:[%s1 + $0x114] sm:$0xf]
    %v111 = vld [vmem:[%s1 + $0x118] sm:$0xf]
    %v112 = vld [vmem:[%s1 + $0x11c] sm:$0xf]
    %v113 = vld [vmem:[%s1 + $0x120] sm:$0xf]
    %v114 = vld [vmem:[%s1 + $0x124] sm:$0x3]
    %v127 = vunpack.c.l.b16 %v29
    %v128 = vunpack.c.h.b16 %v29
    %v129 = vunpack.c.l.b16 %v30
    %v130 = vunpack.c.h.b16 %v30
    %v131 = vunpack.c.l.b16 %v31
    %v132 = vunpack.c.l.b16 %v32
    %v133 = vunpack.c.h.b16 %v32
    %v134 = vunpack.c.l.b16 %v33
    %v135 = vunpack.c.h.b16 %v33
    %v136 = vunpack.c.l.b16 %v34
    %v137 = vunpack.c.l.b16 %v35
    %v138 = vunpack.c.h.b16 %v35
    %v139 = vunpack.c.l.b16 %v36
    %v140 = vunpack.c.h.b16 %v36
    %v141 = vunpack.c.l.b16 %v37
    %v142 = vunpack.c.l.b16 %v38
    %v143 = vunpack.c.h.b16 %v38
    %v144 = vunpack.c.l.b16 %v39
    %v145 = vunpack.c.h.b16 %v39
    %v146 = vunpack.c.l.b16 %v40
    %v147 = vpack.c.b16 %v132, %v127
    %v148 = vpack.c.b16 %v133, %v128
    %v149 = vpack.c.b16 %v134, %v129
    %v150 = vpack.c.b16 %v135, %v130
    %v151 = vpack.c.b16 %v136, %v131
    %v152 = vpack.c.b16 %v142, %v137
    %v153 = vpack.c.b16 %v143, %v138
    %v154 = vpack.c.b16 %v144, %v139
    %v155 = vpack.c.b16 %v145, %v140
    %v156 = vpack.c.b16 %v146, %v141
    %v239 = vunpack.c.l.b16 %v41
    %v240 = vunpack.c.l.b16 %v42
    %v241 = vunpack.c.l.b16 %v43
    %v242 = vunpack.c.l.b16 %v44
    %v243 = vunpack.c.l.b16 %v45
    %v244 = vunpack.c.l.b16 %v46
    %v245 = vunpack.c.l.b16 %v47
    %v246 = vunpack.c.l.b16 %v48
    %v247 = vunpack.c.l.b16 %v49
    %v248 = vunpack.c.l.b16 %v50
    %v249 = vunpack.c.l.b16 %v51
    %v250 = vunpack.c.l.b16 %v52
    %v251 = vunpack.c.l.b16 %v53
    %v252 = vunpack.c.l.b16 %v54
    %v253 = vunpack.c.l.b16 %v55
    %v254 = vunpack.c.l.b16 %v56
    %v255 = vunpack.c.l.b16 %v57
    %v256 = vunpack.c.l.b16 %v58
    %v257 = vunpack.c.l.b16 %v59
    %v258 = vunpack.c.l.b16 %v60
    %v259 = vunpack.c.l.b16 %v61
    %v260 = vunpack.c.l.b16 %v62
    %v261 = vunpack.c.l.b16 %v63
    %v262 = vunpack.c.l.b16 %v64
    %v263 = vunpack.c.l.b16 %v65
    %v264 = vunpack.c.l.b16 %v66
    %v265 = vunpack.c.l.b16 %v67
    %v266 = vunpack.c.l.b16 %v68
    %v267 = vunpack.c.l.b16 %v69
    %v268 = vunpack.c.l.b16 %v70
    %v269 = vunpack.c.l.b16 %v71
    %v270 = vunpack.c.l.b16 %v72
    %v271 = vunpack.c.l.b16 %v73
    %v272 = vunpack.c.l.b16 %v74
    %v273 = vunpack.c.l.b16 %v75
    %v274 = vunpack.c.l.b16 %v76
    %v275 = vunpack.c.l.b16 %v77
    %v276 = vunpack.c.l.b16 %v78
    %v277 = vunpack.c.l.b16 %v79
    %v278 = vunpack.c.l.b16 %v80
    %v279 = vunpack.c.l.b16 %v81
    %v280 = vunpack.c.l.b16 %v82
    %v281 = vunpack.c.l.b16 %v83
    %v282 = vunpack.c.l.b16 %v84
    %v283 = vunpack.c.l.b16 %v85
    %v284 = vunpack.c.l.b16 %v86
    %v285 = vunpack.c.l.b16 %v87
    %v286 = vunpack.c.l.b16 %v88
    %v287 = vunpack.c.l.b16 %v89
    %v288 = vunpack.c.l.b16 %v90
    %v289 = vunpack.c.l.b16 %v91
    %v290 = vunpack.c.l.b16 %v92
    %v291 = vunpack.c.l.b16 %v93
    %v292 = vunpack.c.l.b16 %v94
    %v293 = vunpack.c.l.b16 %v95
    %v294 = vunpack.c.l.b16 %v96
    %v295 = vunpack.c.l.b16 %v97
    %v296 = vunpack.c.l.b16 %v98
    %v297 = vunpack.c.l.b16 %v99
    %v298 = vunpack.c.l.b16 %v100
    %v299 = vunpack.c.l.b16 %v101
    %v300 = vunpack.c.l.b16 %v102
    %v301 = vunpack.c.l.b16 %v103
    %v302 = vunpack.c.l.b16 %v104
    %v303 = vunpack.c.l.b16 %v105
    %v304 = vunpack.c.l.b16 %v106
    %v305 = vunpack.c.l.b16 %v107
    %v306 = vunpack.c.l.b16 %v108
    %v307 = vunpack.c.l.b16 %v109
    %v308 = vunpack.c.l.b16 %v110
    %v309 = vunpack.c.l.b16 %v111
    %v310 = vunpack.c.l.b16 %v112
    %v311 = vunpack.c.l.b16 %v113
    %v312 = vunpack.c.l.b16 %v114
    %v313 = vpack.c.b16 %v240, %v239
    %v314 = vpack.c.b16 %v242, %v241
    %v315 = vpack.c.b16 %v244, %v243
    %v316 = vpack.c.b16 %v246, %v245
    %v317 = vpack.c.b16 %v248, %v247
    %v318 = vpack.c.b16 %v250, %v249
    %v319 = vpack.c.b16 %v252, %v251
    %v320 = vpack.c.b16 %v254, %v253
    %v321 = vpack.c.b16 %v256, %v255
    %v322 = vpack.c.b16 %v258, %v257
    %v323 = vpack.c.b16 %v260, %v259
    %v324 = vpack.c.b16 %v262, %v261
    %v325 = vpack.c.b16 %v264, %v263
    %v326 = vpack.c.b16 %v266, %v265
    %v327 = vpack.c.b16 %v268, %v267
    %v328 = vpack.c.b16 %v270, %v269
    %v329 = vpack.c.b16 %v272, %v271
    %v330 = vpack.c.b16 %v274, %v273
    %v331 = vpack.c.b16 %v276, %v275
    %v332 = vpack.c.b16 %v278, %v277
    %v333 = vpack.c.b16 %v280, %v279
    %v334 = vpack.c.b16 %v282, %v281
    %v335 = vpack.c.b16 %v284, %v283
    %v336 = vpack.c.b16 %v286, %v285
    %v337 = vpack.c.b16 %v288, %v287
    %v338 = vpack.c.b16 %v290, %v289
    %v339 = vpack.c.b16 %v292, %v291
    %v340 = vpack.c.b16 %v294, %v293
    %v341 = vpack.c.b16 %v296, %v295
    %v342 = vpack.c.b16 %v298, %v297
    %v343 = vpack.c.b16 %v300, %v299
    %v344 = vpack.c.b16 %v302, %v301
    %v345 = vpack.c.b16 %v304, %v303
    %v346 = vpack.c.b16 %v306, %v305
    %v347 = vpack.c.b16 %v308, %v307
    %v348 = vpack.c.b16 %v310, %v309
    %v349 = vpack.c.b16 %v312, %v311
    %vm386 = vcmask 621568
    %v388 = vsel %vm386, %v151, 0
    %v391 = vsel %vm386, %v156, 0
    %vm393 = vcmask 1045504
    %v395 = vsel %vm393, %v349, 0
    %397 = vmatpush.bf16.msra.mxu0 %v320
    %398 = vmatpush.bf16.msra.mxu0 %v319
    %399 = vmatpush.bf16.msra.mxu0 %v318
    %400 = vmatpush.bf16.msra.mxu0 %v317
    %401 = vmatpush.bf16.msra.mxu0 %v316
    %402 = vmatpush.bf16.msra.mxu0 %v315
    %403 = vmatpush.bf16.msra.mxu0 %v314
    %404 = vmatpush.bf16.msra.mxu0 %v313
    %405 = vmatmul.bf16.gmra.mxu0 %v147
    %v406 = vpop.f32.mrf.mxu0
    %v407 = vadd.f32 0.0, %v406
    %v408 = vpop.f32.mrf.mxu0
    %v409 = vadd.f32 0.0, %v408
    %410 = vmatmul.bf16.gmra.mxu0 %v152
    %v411 = vpop.f32.mrf.mxu0
    %v412 = vadd.f32 0.0, %v411
    %v413 = vpop.f32.mrf.mxu0
    %v414 = vadd.f32 0.0, %v413
    %415 = vdwg.mxu0
    %416 = vmatpush.bf16.msra.mxu0 %v328
    %417 = vmatpush.bf16.msra.mxu0 %v327
    %418 = vmatpush.bf16.msra.mxu0 %v326
    %419 = vmatpush.bf16.msra.mxu0 %v325
    %420 = vmatpush.bf16.msra.mxu0 %v324
    %421 = vmatpush.bf16.msra.mxu0 %v323
    %422 = vmatpush.bf16.msra.mxu0 %v322
    %423 = vmatpush.bf16.msra.mxu0 %v321
    %424 = vmatmul.bf16.gmra.mxu0 %v148
    %v425 = vpop.f32.mrf.mxu0
    %v426 = vadd.f32 %v407, %v425
    %v427 = vpop.f32.mrf.mxu0
    %v428 = vadd.f32 %v409, %v427
    %429 = vmatmul.bf16.gmra.mxu0 %v153
    %v430 = vpop.f32.mrf.mxu0
    %v431 = vadd.f32 %v412, %v430
    %v432 = vpop.f32.mrf.mxu0
    %v433 = vadd.f32 %v414, %v432
    %434 = vdwg.mxu0
    %435 = vmatpush.bf16.msra.mxu0 %v336
    %436 = vmatpush.bf16.msra.mxu0 %v335
    %437 = vmatpush.bf16.msra.mxu0 %v334
    %438 = vmatpush.bf16.msra.mxu0 %v333
    %439 = vmatpush.bf16.msra.mxu0 %v332
    %440 = vmatpush.bf16.msra.mxu0 %v331
    %441 = vmatpush.bf16.msra.mxu0 %v330
    %442 = vmatpush.bf16.msra.mxu0 %v329
    %443 = vmatmul.bf16.gmra.mxu0 %v149
    %v444 = vpop.f32.mrf.mxu0
    %v445 = vadd.f32 %v426, %v444
    %v446 = vpop.f32.mrf.mxu0
    %v447 = vadd.f32 %v428, %v446
    %448 = vmatmul.bf16.gmra.mxu0 %v154
    %v449 = vpop.f32.mrf.mxu0
    %v450 = vadd.f32 %v431, %v449
    %v451 = vpop.f32.mrf.mxu0
    %v452 = vadd.f32 %v433, %v451
    %453 = vdwg.mxu0
    %454 = vmatpush.bf16.msra.mxu0 %v344
    %455 = vmatpush.bf16.msra.mxu0 %v343
    %456 = vmatpush.bf16.msra.mxu0 %v342
    %457 = vmatpush.bf16.msra.mxu0 %v341
    %458 = vmatpush.bf16.msra.mxu0 %v340
    %459 = vmatpush.bf16.msra.mxu0 %v339
    %460 = vmatpush.bf16.msra.mxu0 %v338
    %461 = vmatpush.bf16.msra.mxu0 %v337
    %462 = vmatmul.bf16.gmra.mxu0 %v150
    %v463 = vpop.f32.mrf.mxu0
    %v464 = vadd.f32 %v445, %v463
    %v465 = vpop.f32.mrf.mxu0
    %v466 = vadd.f32 %v447, %v465
    %467 = vmatmul.bf16.gmra.mxu0 %v155
    %v468 = vpop.f32.mrf.mxu0
    %v469 = vadd.f32 %v450, %v468
    %v470 = vpop.f32.mrf.mxu0
    %v471 = vadd.f32 %v452, %v470
    %472 = vdwg.mxu0
    %473 = vmatpush.bf16.msra.mxu0 0
    %474 = vmatpush.bf16.msra.mxu0 0
    %475 = vmatpush.bf16.msra.mxu0 0
    %476 = vmatpush.bf16.msra.mxu0 %v395
    %477 = vmatpush.bf16.msra.mxu0 %v348
    %478 = vmatpush.bf16.msra.mxu0 %v347
    %479 = vmatpush.bf16.msra.mxu0 %v346
    %480 = vmatpush.bf16.msra.mxu0 %v345
    %481 = vmatmul.bf16.gmra.mxu0 %v388
    %v482 = vpop.f32.mrf.mxu0
    %v483 = vadd.f32 %v464, %v482
    %v484 = vpop.f32.mrf.mxu0
    %v485 = vadd.f32 %v466, %v484
    %486 = vmatmul.bf16.gmra.mxu0 %v391
    %v487 = vpop.f32.mrf.mxu0
    %v488 = vadd.f32 %v469, %v487
    %v489 = vpop.f32.mrf.mxu0
    %v490 = vadd.f32 %v471, %v489
    %491 = vdwg.mxu0
    %v492 = vadd.f32 %v25, %v483
    %v493 = vadd.f32 %v26, %v485
    %v494 = vadd.f32 %v27, %v488
    %v495 = vadd.f32 %v28, %v490
    %vm496 = vcmask 261120
    %497 = vst.msk [vmem:[#allocation2] sm:$0xff] %vm496, %v492
    %498 = vst.msk [vmem:[#allocation2 + $0x8] sm:$0xff] %vm496, %v493
    %499 = vst.msk [vmem:[#allocation2 + $0x10] sm:$0xff] %vm496, %v494
    %500 = vst.msk [vmem:[#allocation2 + $0x18] sm:$0xff] %vm496, %v495
    // Predicated region
    $region18: #{_matmul_jit.1} parent=1 // pred_check
      %p501 = pneg %p16
    $region19: #{_matmul_jit.1} parent=1 // pred_check_branch
      %503 = sbr.rel (%p501) target = $region21
    $region20: #{_matmul_jit.1} parent=1 // pred_region
      %v504 = vld [vmem:[#allocation2] sm:$0xff]
      %v505 = vld [vmem:[#allocation2 + $0x8] sm:$0xff]
      %v506 = vld [vmem:[#allocation2 + $0x10] sm:$0xff]
      %v507 = vld [vmem:[#allocation2 + $0x18] sm:$0xff]
      %v508 = vld [vmem:[%s2] sm:$0x1]
      %v510 = vperm.slane %v508, 0
      %v512 = vadd.f32 %v504, %v510
      %v513 = vadd.f32 %v505, %v510
      %v514 = vadd.f32 %v506, %v510
      %v515 = vadd.f32 %v507, %v510
      %v516 = vpack.c.bf16 %v512, %v512
      %v517 = vpack.c.bf16 %v513, %v513
      %v518 = vpack.c.bf16 %v514, %v514
      %v519 = vpack.c.bf16 %v515, %v515
      %vm520 = vcmask 257024
      %521 = vst.msk [vmem:[#allocation3] sm:$0xf] %vm520, %v516
      %522 = vst.msk [vmem:[#allocation3 + $0x4] sm:$0xf] %vm520, %v517
      %523 = vst.msk [vmem:[#allocation3 + $0x8] sm:$0xf] %vm520, %v518
      %524 = vst.msk [vmem:[#allocation3 + $0xc] sm:$0xf] %vm520, %v519
    $region21: #{_matmul_jit.1} parent=1 // pred_fallthru
      _
    // Predicated region
    $region22: #{_matmul_jit.1} parent=1 // pred_check
      _
    $region23: #{_matmul_jit.1} parent=1 // pred_check_branch
      %526 = sbr.rel (0) target = $region25
    $region24: #{_matmul_jit.1} parent=1 // pred_region
      %528 = vsyncadd [#allocation4], 0
      %s529 = sshll.u32 [#allocation3], 4
      %s530 = int_to_ptr.vmem [resolvable:$true] %s529
      %s531 = sshll.u32 %s3, 4
      %s532 = int_to_ptr.hbm [resolvable:$true] %s531
      %537 = dma.vmem_to_hbm [thread:$0]  %s530, 256, %s532, [#allocation4], 64, 64, 4
    $region25: #{_matmul_jit.1} parent=1 // pred_fallthru
      _
    // Predicated region
    $region26: #{_matmul_jit.1} parent=1 // pred_check
      _
    $region27: #{_matmul_jit.1} parent=1 // pred_check_branch
      %539 = sbr.rel (0) target = $region29
    $region28: #{_matmul_jit.1} parent=1 // pred_region
      %541 = dma.done [#allocation4], 256
    $region29: #{_matmul_jit.1} parent=1 // pred_fallthru
      _
    %542 = vsyncpa [#allocation4], 1

</llo_original>
